<compile_context>
chip_gen: v5e
topology: v5e:2x2
jax: 0.10.0
libtpu: 0.0.40
codegen_flags: <defaults>
</compile_context>

<pallas_src>
import jax
import jax.numpy as jnp
from jax.experimental import pallas as pl
from jax.experimental.pallas import tpu as pltpu


def _fwd_kernel(x_ref, w_ref, bc_ref, wp_ref, bp_ref, out_ref):
    """Fused conv1d -> bias -> ReLU -> flatten-linear -> sigmoid for one batch tile.

    x_ref  : (TB, L_pad, C_in)      channel-last activations, bf16 (streamed)
    w_ref  : (K, C_in, C_hid)       conv weight, w_ref[k][c, h] = w_conv[h, c, k], bf16 (resident)
    bc_ref : (1, C_hid)             conv bias, f32                         (resident)
    wp_ref : (L_out_pad, C_hid)     predictor weight, wp[l, h] = W[0, h*L_out + l],
                                    rows l >= L_out are zero, f32          (resident)
    bp_ref : (1, 1)                 predictor bias                         (SMEM scalar)
    out_ref: (1, 1, TB)             sigmoid probabilities, batch on lanes
    """
    TB, _, C_in = x_ref.shape
    K = w_ref.shape[0]
    L_out_pad, C_hid = wp_ref.shape

    # Conv1d (stride 1, no padding) as K shifted-window MXU matmuls contracting C_in.
    # Each window reshape only merges leading dims (L_out_pad % 8 == 0), so it is a
    # cheap relabel; only the matmul operands are bf16, the accumulator is f32.
    def window(k):
        return x_ref[:, k:k + L_out_pad, :].reshape(TB * L_out_pad, C_in)

    acc = jnp.dot(window(0), w_ref[0], preferred_element_type=jnp.float32)
    for k in range(1, K):                       # K is small and static: unrolled
        acc = acc + jnp.dot(window(k), w_ref[k], preferred_element_type=jnp.float32)

    e = jnp.maximum(acc + bc_ref[...], 0.0)     # bias + ReLU, f32, (TB*L_out_pad, C_hid)

    # Flatten + Linear(->1): weight by wp[l, h] (zero rows kill the padded l positions),
    # sublane (l) reduce first keeps C_hid on lanes, then one lane reduce -> (TB, 1).
    p = e.reshape(TB, L_out_pad, C_hid) * wp_ref[...][None, :, :]
    t = jnp.sum(p, axis=1)                                        # (TB, C_hid)
    logits = jnp.sum(t, axis=1, keepdims=True) + bp_ref[0, 0]     # (TB, 1)

    probs = jax.nn.sigmoid(logits)                                # f32 (EUP)
    # Single (TB,1)->(1,TB) repack, then a lane-dense (1,1,TB) store.
    out_ref[...] = jnp.transpose(probs, (1, 0))[None]


def _round_up(x, m):
    return (x + m - 1) // m * m


def _vmem_limit_bytes():
    """Scoped-VMEM budget: ~half the physical per-core VMEM, clamped to [32, 96] MiB
    (v5e/v6e: 128 MiB -> 64 MiB; v7x: 64 MiB -> 32 MiB)."""
    cap = 96 * 1024 * 1024
    try:
        cap = int(getattr(pltpu.get_tpu_info(), "vmem_capacity_bytes", cap))
    except Exception:
        pass
    return int(min(max(32 * 1024 * 1024, cap // 2), 96 * 1024 * 1024))


def _choose_batch_tile(B, L_pad, L_out_pad, C_in, C_hid, vmem_limit_bytes):
    """Largest batch tile that (a) fits a VMEM budget incl. Mosaic lane/sublane padding
    and double-buffering, and (b) still leaves >= 2 grid steps for megacore / pipelining."""
    lanes_in = _round_up(C_in, 128)
    lanes_hid = _round_up(C_hid, 128)
    bytes_x_row = 2 * _round_up(L_pad, 16) * lanes_in * 2        # bf16 stream, double-buffered
    bytes_f32_row = 3 * _round_up(L_out_pad, 8) * lanes_hid * 4  # live f32 intermediates
    per_row = bytes_x_row + bytes_f32_row
    budget = int(vmem_limit_bytes * 0.6)
    tb_budget = max(8, (budget // per_row) // 8 * 8)
    tb_split = max(8, _round_up((B + 1) // 2, 8))                # keep G >= 2 when B allows
    return int(min(tb_budget, tb_split, 512))


def conv1d_encoder_predictor(x, w_conv, b_conv, w_pred, b_pred):
    """x: (B, C_in, L) f32. Returns (B, 1) probabilities, matching the PyTorch forward."""
    B, C_in, L = x.shape
    C_hid, C_in_w, K = w_conv.shape
    assert C_in_w == C_in
    L_out = L - K + 1
    assert L_out >= 1
    assert w_pred.shape == (1, C_hid * L_out)

    L_out_pad = _round_up(L_out, 8)          # sublane-aligned conv output length
    L_pad = L_out_pad + K - 1                # >= L; every in-kernel window stays in bounds

    vmem_limit = _vmem_limit_bytes()
    TB = _choose_batch_tile(B, L_pad, L_out_pad, C_in, C_hid, vmem_limit)
    B_pad = _round_up(B, TB)
    G = B_pad // TB

    # ---- operand repacking: ONE pass over the raw activations (transpose + cast + pad),
    #      no K-times im2col buffer ever hits HBM. --------------------------------------
    xt = jnp.transpose(x, (0, 2, 1)).astype(jnp.bfloat16)            # (B, L, C_in)
    xt = jnp.pad(xt, ((0, B_pad - B), (0, L_pad - L), (0, 0)))       # zero pad
    wk = jnp.transpose(w_conv, (2, 1, 0)).astype(jnp.bfloat16)       # (K, C_in, C_hid)
    bc = b_conv.reshape(1, C_hid).astype(jnp.float32)
    wp = w_pred.reshape(C_hid, L_out).T.astype(jnp.float32)          # (L_out, C_hid)
    wp = jnp.pad(wp, ((0, L_out_pad - L_out), (0, 0)))               # zero rows for padded l
    bp = b_pred.reshape(1, 1).astype(jnp.float32)

    flops = 2 * B_pad * L_out_pad * C_in * K * C_hid + 4 * B_pad * L_out_pad * C_hid
    bytes_accessed = (xt.size * 2 + wk.size * 2
                      + (bc.size + wp.size + bp.size) * 4 + B_pad * 4)
    cost = pl.CostEstimate(flops=flops, transcendentals=B_pad,
                           bytes_accessed=bytes_accessed)

    out = pl.pallas_call(
        _fwd_kernel,
        out_shape=jax.ShapeDtypeStruct((G, 1, TB), jnp.float32),
        grid=(G,),
        in_specs=[
            pl.BlockSpec((TB, L_pad, C_in), lambda i: (i, 0, 0)),    # streamed bf16 batch tile
            pl.BlockSpec((K, C_in, C_hid), lambda i: (0, 0, 0)),     # resident conv weight
            pl.BlockSpec((1, C_hid), lambda i: (0, 0)),              # resident conv bias
            pl.BlockSpec((L_out_pad, C_hid), lambda i: (0, 0)),      # resident predictor weight
            pl.BlockSpec(memory_space=pltpu.MemorySpace.SMEM),       # scalar predictor bias
        ],
        out_specs=pl.BlockSpec((1, 1, TB), lambda i: (i, 0, 0)),
        compiler_params=pltpu.CompilerParams(
            dimension_semantics=("parallel",),                       # batch tiles across TCs
            vmem_limit_bytes=vmem_limit,
        ),
        cost_estimate=cost,
    )(xt, wk, bc, wp, bp)

    return out.reshape(B_pad)[:B].reshape(B, 1)


def _reference(x, w_conv, b_conv, w_pred, b_pred):
    """Plain-JAX f32 reference mirroring PyTorch semantics."""
    B, C_in, L = x.shape
    C_hid, _, K = w_conv.shape
    L_out = L - K + 1
    e = jnp.zeros((B, C_hid, L_out), jnp.float32)
    for k in range(K):
        e = e + jnp.einsum("bcl,hc->bhl", x[:, :, k:k + L_out], w_conv[:, :, k])
    e = jax.nn.relu(e + b_conv[None, :, None])
    flat = e.reshape(B, C_hid * L_out)
    return jax.nn.sigmoid(flat @ w_pred.T + b_pred)


if __name__ == "__main__":
    # Small shapes consistent with a Conv1d encoder + scalar-probability predictor.
    B, C_in, L = 2, 4, 16
    C_hid, K = 8, 3
    L_out = L - K + 1

    key = jax.random.PRNGKey(0)
    kx, kwc, kbc, kwp, kbp = jax.random.split(key, 5)

    x = jax.random.normal(kx, (B, C_in, L), dtype=jnp.float32)
    w_conv = jax.random.uniform(kwc, (C_hid, C_in, K), jnp.float32, -0.3, 0.3)
    b_conv = jax.random.uniform(kbc, (C_hid,), jnp.float32, -0.3, 0.3)
    w_pred = jax.random.uniform(kwp, (1, C_hid * L_out), jnp.float32, -0.1, 0.1)
    b_pred = jax.random.uniform(kbp, (1,), jnp.float32, -0.1, 0.1)

    out = conv1d_encoder_predictor(x, w_conv, b_conv, w_pred, b_pred)
    out = jax.block_until_ready(out)

    ref = _reference(x, w_conv, b_conv, w_pred, b_pred)
    assert out.shape == (B, 1)
    # bf16 matmul inputs (f32 accumulation) -> loosened tolerance per review.
    assert jnp.allclose(out, ref, atol=2e-2, rtol=2e-2), (out, ref)

    print("KERNEL_OK")
</pallas_src>

<mosaic_0001>
module attributes {stable_mosaic.version = 11 : i64} {
  func.func @_fwd_kernel(%arg0: i32, %arg1: memref<8x18x4xbf16, #tpu.memory_space<vmem>>, %arg2: memref<3x4x8xbf16, #tpu.memory_space<vmem>>, %arg3: memref<1x8xf32, #tpu.memory_space<vmem>>, %arg4: memref<16x8xf32, #tpu.memory_space<vmem>>, %arg5: memref<1x1xf32, #tpu.memory_space<smem>>, %arg6: memref<1x1x8xf32, #tpu.memory_space<vmem>>) attributes {dimension_semantics = [#tpu.dimension_semantics<parallel>], iteration_bounds = array<i64: 1>, scalar_prefetch = 0 : i64, scratch_operands = 0 : i64, tpu.core_type = #tpu.core_type<tc>, window_params = [{transform_indices = @transform_0, window_bounds = array<i64: 8, 18, 4>}, {pipeline_mode = #tpu.pipeline_mode<synchronous>, transform_indices = @transform_1, window_bounds = array<i64: 3, 4, 8>}, {pipeline_mode = #tpu.pipeline_mode<synchronous>, transform_indices = @transform_2, window_bounds = array<i64: 1, 8>}, {pipeline_mode = #tpu.pipeline_mode<synchronous>, transform_indices = @transform_3, window_bounds = array<i64: 16, 8>}, {transform_indices = @transform_4, window_bounds = array<i64: 1, 1>}, {transform_indices = @transform_5, window_bounds = array<i64: 1, 1, 8>}]} {
    %c0 = arith.constant 0 : index
    %c0_0 = arith.constant 0 : index
    %c0_1 = arith.constant 0 : index
    %0 = vector.load %arg1[%c0, %c0_0, %c0_1] : memref<8x18x4xbf16, #tpu.memory_space<vmem>>, vector<8x16x4xbf16>
    %1 = vector.shape_cast %0 : vector<8x16x4xbf16> to vector<128x4xbf16>
    %c0_2 = arith.constant 0 : index
    %c0_3 = arith.constant 0 : index
    %c0_4 = arith.constant 0 : index
    %2 = vector.load %arg2[%c0_2, %c0_3, %c0_4] : memref<3x4x8xbf16, #tpu.memory_space<vmem>>, vector<1x4x8xbf16>
    %3 = vector.shape_cast %2 : vector<1x4x8xbf16> to vector<4x8xbf16>
    %cst = arith.constant dense<0.000000e+00> : vector<128x8xf32>
    %4 = tpu.matmul %1, %3, %cst {dimension_numbers = #tpu.dot_dimension_numbers<[1], [0], [0], [1], [0, 0, 1, 1], [], []>} : vector<128x4xbf16>, vector<4x8xbf16>, vector<128x8xf32> -> vector<128x8xf32>
    %c0_5 = arith.constant 0 : index
    %c1 = arith.constant 1 : index
    %c0_6 = arith.constant 0 : index
    %5 = vector.load %arg1[%c0_5, %c1, %c0_6] : memref<8x18x4xbf16, #tpu.memory_space<vmem>>, vector<8x16x4xbf16>
    %6 = vector.shape_cast %5 : vector<8x16x4xbf16> to vector<128x4xbf16>
    %c1_7 = arith.constant 1 : index
    %c0_8 = arith.constant 0 : index
    %c0_9 = arith.constant 0 : index
    %7 = vector.load %arg2[%c1_7, %c0_8, %c0_9] : memref<3x4x8xbf16, #tpu.memory_space<vmem>>, vector<1x4x8xbf16>
    %8 = vector.shape_cast %7 : vector<1x4x8xbf16> to vector<4x8xbf16>
    %cst_10 = arith.constant dense<0.000000e+00> : vector<128x8xf32>
    %9 = tpu.matmul %6, %8, %cst_10 {dimension_numbers = #tpu.dot_dimension_numbers<[1], [0], [0], [1], [0, 0, 1, 1], [], []>} : vector<128x4xbf16>, vector<4x8xbf16>, vector<128x8xf32> -> vector<128x8xf32>
    %10 = arith.addf %4, %9 : vector<128x8xf32>
    %c0_11 = arith.constant 0 : index
    %c2 = arith.constant 2 : index
    %c0_12 = arith.constant 0 : index
    %11 = vector.load %arg1[%c0_11, %c2, %c0_12] : memref<8x18x4xbf16, #tpu.memory_space<vmem>>, vector<8x16x4xbf16>
    %12 = vector.shape_cast %11 : vector<8x16x4xbf16> to vector<128x4xbf16>
    %c2_13 = arith.constant 2 : index
    %c0_14 = arith.constant 0 : index
    %c0_15 = arith.constant 0 : index
    %13 = vector.load %arg2[%c2_13, %c0_14, %c0_15] : memref<3x4x8xbf16, #tpu.memory_space<vmem>>, vector<1x4x8xbf16>
    %14 = vector.shape_cast %13 : vector<1x4x8xbf16> to vector<4x8xbf16>
    %cst_16 = arith.constant dense<0.000000e+00> : vector<128x8xf32>
    %15 = tpu.matmul %12, %14, %cst_16 {dimension_numbers = #tpu.dot_dimension_numbers<[1], [0], [0], [1], [0, 0, 1, 1], [], []>} : vector<128x4xbf16>, vector<4x8xbf16>, vector<128x8xf32> -> vector<128x8xf32>
    %16 = arith.addf %10, %15 : vector<128x8xf32>
    %c0_17 = arith.constant 0 : index
    %c0_18 = arith.constant 0 : index
    %17 = vector.load %arg3[%c0_17, %c0_18] : memref<1x8xf32, #tpu.memory_space<vmem>>, vector<1x8xf32>
    %18 = vector.broadcast %17 : vector<1x8xf32> to vector<128x8xf32>
    %19 = arith.addf %16, %18 : vector<128x8xf32>
    %cst_19 = arith.constant 0.000000e+00 : f32
    %20 = vector.broadcast %cst_19 : f32 to vector<128x8xf32>
    %21 = arith.maximumf %19, %20 : vector<128x8xf32>
    %22 = vector.shape_cast %21 : vector<128x8xf32> to vector<8x16x8xf32>
    %c0_20 = arith.constant 0 : index
    %c0_21 = arith.constant 0 : index
    %23 = vector.load %arg4[%c0_20, %c0_21] : memref<16x8xf32, #tpu.memory_space<vmem>>, vector<16x8xf32>
    %24 = vector.shape_cast %23 : vector<16x8xf32> to vector<1x16x8xf32>
    %25 = vector.broadcast %24 : vector<1x16x8xf32> to vector<8x16x8xf32>
    %26 = arith.mulf %22, %25 : vector<8x16x8xf32>
    %cst_22 = arith.constant dense<0.000000e+00> : vector<8x8xf32>
    %27 = vector.multi_reduction <add>, %26, %cst_22 [1] : vector<8x16x8xf32> to vector<8x8xf32>
    %cst_23 = arith.constant dense<0.000000e+00> : vector<8xf32>
    %28 = vector.multi_reduction <add>, %27, %cst_23 [1] : vector<8x8xf32> to vector<8xf32>
    %29 = vector.shape_cast %28 : vector<8xf32> to vector<8x1xf32>
    %c0_24 = arith.constant 0 : index
    %c0_25 = arith.constant 0 : index
    %30 = memref.load %arg5[%c0_24, %c0_25] : memref<1x1xf32, #tpu.memory_space<smem>>
    %31 = vector.broadcast %30 : f32 to vector<8x1xf32>
    %32 = arith.addf %29, %31 : vector<8x1xf32>
    %33 = arith.negf %32 : vector<8x1xf32>
    %34 = math.exp %33 : vector<8x1xf32>
    %cst_26 = arith.constant 1.000000e+00 : f32
    %35 = vector.broadcast %cst_26 : f32 to vector<8x1xf32>
    %36 = arith.addf %35, %34 : vector<8x1xf32>
    %37 = arith.divf %35, %36 : vector<8x1xf32>
    %38 = tpu.transpose %37, [1, 0] : vector<8x1xf32> -> vector<1x8xf32>
    %39 = vector.shape_cast %38 : vector<1x8xf32> to vector<1x1x8xf32>
    %c0_27 = arith.constant 0 : index
    %c0_28 = arith.constant 0 : index
    %c0_29 = arith.constant 0 : index
    %40 = vector.load %arg6[%c0_27, %c0_28, %c0_29] : memref<1x1x8xf32, #tpu.memory_space<vmem>>, vector<1x1x8xf32>
    tpu.vector_store %arg6[%c0_27, %c0_28, %c0_29], %39 {strides = array<i32>} : memref<1x1x8xf32, #tpu.memory_space<vmem>>, vector<1x1x8xf32>,
    return
  }
  func.func @transform_0(%arg0: i32) -> (i32, i32, i32) {
    %c0_i32 = arith.constant 0 : i32
    %c0_i32_0 = arith.constant 0 : i32
    %c0_i32_1 = arith.constant 0 : i32
    return %arg0, %c0_i32, %c0_i32_0 : i32, i32, i32
  }
  func.func @transform_1(%arg0: i32) -> (i32, i32, i32) {
    %c0_i32 = arith.constant 0 : i32
    %c0_i32_0 = arith.constant 0 : i32
    %c0_i32_1 = arith.constant 0 : i32
    %c0_i32_2 = arith.constant 0 : i32
    return %c0_i32, %c0_i32_0, %c0_i32_1 : i32, i32, i32
  }
  func.func @transform_2(%arg0: i32) -> (i32, i32) {
    %c0_i32 = arith.constant 0 : i32
    %c0_i32_0 = arith.constant 0 : i32
    %c0_i32_1 = arith.constant 0 : i32
    return %c0_i32, %c0_i32_0 : i32, i32
  }
  func.func @transform_3(%arg0: i32) -> (i32, i32) {
    %c0_i32 = arith.constant 0 : i32
    %c0_i32_0 = arith.constant 0 : i32
    %c0_i32_1 = arith.constant 0 : i32
    return %c0_i32, %c0_i32_0 : i32, i32
  }
  func.func @transform_4(%arg0: i32) -> (i32, i32) {
    %c0_i32 = arith.constant 0 : i32
    %c0_i32_0 = arith.constant 0 : i32
    %c0_i32_1 = arith.constant 0 : i32
    return %c0_i32, %c0_i32_0 : i32, i32
  }
  func.func @transform_5(%arg0: i32) -> (i32, i32, i32) {
    %c0_i32 = arith.constant 0 : i32
    %c0_i32_0 = arith.constant 0 : i32
    %c0_i32_1 = arith.constant 0 : i32
    return %arg0, %c0_i32, %c0_i32_0 : i32, i32, i32
  }
}

</mosaic_0001>

<llo_original>
// kernel: tpu_custom_call.1
$region0: #{tpu_custom_call.1}
  #allocation0 [shape = 'u32[]', space=smem, size = 0x4, offset = 0x4, fixed_abs, tag = 'smem constant byte address 0x4 - core index']
  #allocation1 [shape = 'u32[72,128]{1,0:T(1,128)}', space=vmem, size = 0x9000, scoped, tag = 'internal scratch']
  #allocation2 [shape = 'f32[1,1]{1,0:T(1,128)S(6)}', space=smem, size = 0x200, scoped, tag = 'scoped memory for tpu_custom_call.1']
  %s0 = inlined_call_operand.vmem [shape: bf16[8,18,4], index: 0, kind: input, shape index: {}]
  %s1 = inlined_call_operand.vmem [shape: bf16[3,4,8], index: 1, kind: input, shape index: {}]
  %s2 = inlined_call_operand.vmem [shape: f32[1,8], index: 2, kind: input, shape index: {}]
  %s3 = inlined_call_operand.vmem [shape: f32[16,8], index: 3, kind: input, shape index: {}]
  %s4 = inlined_call_operand.<no memory space> [shape: f32[1,1], index: 4, kind: input, shape index: {}]
  %s5 = inlined_call_operand.hbm [shape: f32[1,1,8], index: 5, kind: output, shape index: {}]
  %s6 = sld [smem:[#allocation0]]
  $region30: #{tpu_custom_call.1} parent=0
    _
  %s8 = ssub.s32 1, %s6
  %s9 = scalar_select 0, %s8, %s6
  %10 = sst [smem:[#allocation2]] %s4
  $region1: #{tpu_custom_call.1} parent=0
    #allocation3 [shape = 'u8[512]{0}', space=vmem, size = 0x400, scoped, tag = 'output window, operand 0, single buffered']
    #allocation4 [shape = 's32[1]{0}', space=sflag, size = 0x4, scoped, tag = 'scoped memory for tpu_custom_call.1']
    %11 = vsyncpa [#allocation4], 0
    // Predicated region
    $region2: #{tpu_custom_call.1} parent=1 // pred_check
      _
    $region3: #{tpu_custom_call.1} parent=1 // pred_check_branch
      %13 = sbr.rel (0) target = $region5
    $region4: #{tpu_custom_call.1} parent=1 // pred_region
      _
    $region5: #{tpu_custom_call.1} parent=1 // pred_fallthru
      _
    // Predicated region
    $region6: #{tpu_custom_call.1} parent=1 // pred_check
      _
    $region7: #{tpu_custom_call.1} parent=1 // pred_check_branch
      %15 = sbr.rel (0) target = $region9
    $region8: #{tpu_custom_call.1} parent=1 // pred_region
      _
    $region9: #{tpu_custom_call.1} parent=1 // pred_fallthru
      _
    // Predicated region
    $region10: #{tpu_custom_call.1} parent=1 // pred_check
      _
    $region11: #{tpu_custom_call.1} parent=1 // pred_check_branch
      %17 = sbr.rel (0) target = $region13
    $region12: #{tpu_custom_call.1} parent=1 // pred_region
      _
    $region13: #{tpu_custom_call.1} parent=1 // pred_fallthru
      _
    // Predicated region
    $region14: #{tpu_custom_call.1} parent=1 // pred_check
      _
    $region15: #{tpu_custom_call.1} parent=1 // pred_check_branch
      %19 = sbr.rel (0) target = $region17
    $region16: #{tpu_custom_call.1} parent=1 // pred_region
      _
    $region17: #{tpu_custom_call.1} parent=1 // pred_fallthru
      _
    // Predicated region
    $region18: #{tpu_custom_call.1} parent=1 // pred_check
      _
    $region19: #{tpu_custom_call.1} parent=1 // pred_check_branch
      %21 = sbr.rel (0) target = $region21
    $region20: #{tpu_custom_call.1} parent=1 // pred_region
      _
    $region21: #{tpu_custom_call.1} parent=1 // pred_fallthru
      _
    %v23 = vld [vmem:[%s0] sm:$0xf]
    %v24 = vld [vmem:[%s0 + $0x4] sm:$0xf]
    %v25 = vld [vmem:[%s0 + $0xc] sm:$0xf]
    %v26 = vld [vmem:[%s0 + $0x10] sm:$0xf]
    %v27 = vld [vmem:[%s0 + $0x18] sm:$0xf]
    %v28 = vld [vmem:[%s0 + $0x1c] sm:$0xf]
    %v29 = vld [vmem:[%s0 + $0x24] sm:$0xf]
    %v30 = vld [vmem:[%s0 + $0x28] sm:$0xf]
    %v31 = vld [vmem:[%s0 + $0x30] sm:$0xf]
    %v32 = vld [vmem:[%s0 + $0x34] sm:$0xf]
    %v33 = vld [vmem:[%s0 + $0x3c] sm:$0xf]
    %v34 = vld [vmem:[%s0 + $0x40] sm:$0xf]
    %v35 = vld [vmem:[%s0 + $0x48] sm:$0xf]
    %v36 = vld [vmem:[%s0 + $0x4c] sm:$0xf]
    %v37 = vld [vmem:[%s0 + $0x54] sm:$0xf]
    %v38 = vld [vmem:[%s0 + $0x58] sm:$0xf]
    %v39 = vld [vmem:[%s1] sm:$0x3]
    %v40 = vld [vmem:[%s0 + $0x8] sm:$0x1]
    %v41 = vld [vmem:[%s0 + $0x14] sm:$0x1]
    %v42 = vld [vmem:[%s0 + $0x20] sm:$0x1]
    %v43 = vld [vmem:[%s0 + $0x2c] sm:$0x1]
    %v44 = vld [vmem:[%s0 + $0x38] sm:$0x1]
    %v45 = vld [vmem:[%s0 + $0x44] sm:$0x1]
    %v46 = vld [vmem:[%s0 + $0x50] sm:$0x1]
    %v47 = vld [vmem:[%s0 + $0x5c] sm:$0x1]
    %vm48 = vsmask.f32 3328
    %vm49 = vsmask.f32 7440
    %vm50 = vmor %vm48, %vm49
    %v52 = vshrl.u32 %v23, 16
    %v54 = vrot.slane %v52, 4
    %v55 = vshll.u32 %v23, 16
    %v57 = vrot.slane %v55, 5
    %v58 = vor.u32 %v54, %v57
    %v59 = vrot.slane %v58, 4
    %v61 = vshll.u32 %v24, 16
    %v63 = vrot.slane %v61, 5
    %v64 = vsel %vm50, %v59, %v63
    %v65 = vshrl.u32 %v24, 16
    %v67 = vrot.slane %v65, 4
    %v68 = vor.u32 %v67, %v63
    %v69 = vrot.slane %v68, 4
    %v71 = vshll.u32 %v40, 16
    %v73 = vrot.slane %v71, 5
    %v74 = vsel %vm50, %v69, %v73
    %v76 = vshrl.u32 %v25, 16
    %v78 = vrot.slane %v76, 4
    %v79 = vshll.u32 %v25, 16
    %v81 = vrot.slane %v79, 5
    %v82 = vor.u32 %v78, %v81
    %v83 = vrot.slane %v82, 4
    %v85 = vshll.u32 %v26, 16
    %v87 = vrot.slane %v85, 5
    %v88 = vsel %vm50, %v83, %v87
    %v89 = vshrl.u32 %v26, 16
    %v91 = vrot.slane %v89, 4
    %v92 = vor.u32 %v91, %v87
    %v93 = vrot.slane %v92, 4
    %v95 = vshll.u32 %v41, 16
    %v97 = vrot.slane %v95, 5
    %v98 = vsel %vm50, %v93, %v97
    %v100 = vshrl.u32 %v27, 16
    %v102 = vrot.slane %v100, 4
    %v103 = vshll.u32 %v27, 16
    %v105 = vrot.slane %v103, 5
    %v106 = vor.u32 %v102, %v105
    %v107 = vrot.slane %v106, 4
    %v109 = vshll.u32 %v28, 16
    %v111 = vrot.slane %v109, 5
    %v112 = vsel %vm50, %v107, %v111
    %v113 = vshrl.u32 %v28, 16
    %v115 = vrot.slane %v113, 4
    %v116 = vor.u32 %v115, %v111
    %v117 = vrot.slane %v116, 4
    %v119 = vshll.u32 %v42, 16
    %v121 = vrot.slane %v119, 5
    %v122 = vsel %vm50, %v117, %v121
    %v124 = vshrl.u32 %v29, 16
    %v126 = vrot.slane %v124, 4
    %v127 = vshll.u32 %v29, 16
    %v129 = vrot.slane %v127, 5
    %v130 = vor.u32 %v126, %v129
    %v131 = vrot.slane %v130, 4
    %v133 = vshll.u32 %v30, 16
    %v135 = vrot.slane %v133, 5
    %v136 = vsel %vm50, %v131, %v135
    %v137 = vshrl.u32 %v30, 16
    %v139 = vrot.slane %v137, 4
    %v140 = vor.u32 %v139, %v135
    %v141 = vrot.slane %v140, 4
    %v143 = vshll.u32 %v43, 16
    %v145 = vrot.slane %v143, 5
    %v146 = vsel %vm50, %v141, %v145
    %v148 = vshrl.u32 %v31, 16
    %v150 = vrot.slane %v148, 4
    %v151 = vshll.u32 %v31, 16
    %v153 = vrot.slane %v151, 5
    %v154 = vor.u32 %v150, %v153
    %v155 = vrot.slane %v154, 4
    %v157 = vshll.u32 %v32, 16
    %v159 = vrot.slane %v157, 5
    %v160 = vsel %vm50, %v155, %v159
    %v161 = vshrl.u32 %v32, 16
    %v163 = vrot.slane %v161, 4
    %v164 = vor.u32 %v163, %v159
    %v165 = vrot.slane %v164, 4
    %v167 = vshll.u32 %v44, 16
    %v169 = vrot.slane %v167, 5
    %v170 = vsel %vm50, %v165, %v169
    %v172 = vshrl.u32 %v33, 16
    %v174 = vrot.slane %v172, 4
    %v175 = vshll.u32 %v33, 16
    %v177 = vrot.slane %v175, 5
    %v178 = vor.u32 %v174, %v177
    %v179 = vrot.slane %v178, 4
    %v181 = vshll.u32 %v34, 16
    %v183 = vrot.slane %v181, 5
    %v184 = vsel %vm50, %v179, %v183
    %v185 = vshrl.u32 %v34, 16
    %v187 = vrot.slane %v185, 4
    %v188 = vor.u32 %v187, %v183
    %v189 = vrot.slane %v188, 4
    %v191 = vshll.u32 %v45, 16
    %v193 = vrot.slane %v191, 5
    %v194 = vsel %vm50, %v189, %v193
    %v196 = vshrl.u32 %v35, 16
    %v198 = vrot.slane %v196, 4
    %v199 = vshll.u32 %v35, 16
    %v201 = vrot.slane %v199, 5
    %v202 = vor.u32 %v198, %v201
    %v203 = vrot.slane %v202, 4
    %v205 = vshll.u32 %v36, 16
    %v207 = vrot.slane %v205, 5
    %v208 = vsel %vm50, %v203, %v207
    %v209 = vshrl.u32 %v36, 16
    %v211 = vrot.slane %v209, 4
    %v212 = vor.u32 %v211, %v207
    %v213 = vrot.slane %v212, 4
    %v215 = vshll.u32 %v46, 16
    %v217 = vrot.slane %v215, 5
    %v218 = vsel %vm50, %v213, %v217
    %v220 = vshrl.u32 %v37, 16
    %v222 = vrot.slane %v220, 4
    %v223 = vshll.u32 %v37, 16
    %v225 = vrot.slane %v223, 5
    %v226 = vor.u32 %v222, %v225
    %v227 = vrot.slane %v226, 4
    %v229 = vshll.u32 %v38, 16
    %v231 = vrot.slane %v229, 5
    %v232 = vsel %vm50, %v227, %v231
    %v233 = vshrl.u32 %v38, 16
    %v235 = vrot.slane %v233, 4
    %v236 = vor.u32 %v235, %v231
    %v237 = vrot.slane %v236, 4
    %v239 = vshll.u32 %v47, 16
    %v241 = vrot.slane %v239, 5
    %v242 = vsel %vm50, %v237, %v241
    %s243 = scalar_lea.vmem %s1, 2
    %v244 = vld [vmem:[%s243] sm:$0x3]
    %v245 = vunpack.c.l.b16 %v64
    %v246 = vunpack.c.l.b16 %v74
    %v247 = vunpack.c.l.b16 %v88
    %v248 = vunpack.c.l.b16 %v98
    %v249 = vunpack.c.l.b16 %v112
    %v250 = vunpack.c.l.b16 %v122
    %v251 = vunpack.c.l.b16 %v136
    %v252 = vunpack.c.l.b16 %v146
    %v253 = vunpack.c.l.b16 %v160
    %v254 = vunpack.c.l.b16 %v170
    %v255 = vunpack.c.l.b16 %v184
    %v256 = vunpack.c.l.b16 %v194
    %v257 = vunpack.c.l.b16 %v208
    %v258 = vunpack.c.l.b16 %v218
    %v259 = vunpack.c.l.b16 %v232
    %v260 = vunpack.c.l.b16 %v242
    %v261 = vpack.c.b16 %v246, %v245
    %v262 = vpack.c.b16 %v248, %v247
    %v263 = vpack.c.b16 %v250, %v249
    %v264 = vpack.c.b16 %v252, %v251
    %v265 = vpack.c.b16 %v254, %v253
    %v266 = vpack.c.b16 %v256, %v255
    %v267 = vpack.c.b16 %v258, %v257
    %v268 = vpack.c.b16 %v260, %v259
    %vm269 = vcmask 31744
    %v271 = vsel %vm269, %v261, 0
    %v274 = vsel %vm269, %v262, 0
    %v277 = vsel %vm269, %v263, 0
    %v280 = vsel %vm269, %v264, 0
    %v283 = vsel %vm269, %v265, 0
    %v286 = vsel %vm269, %v266, 0
    %v289 = vsel %vm269, %v267, 0
    %v292 = vsel %vm269, %v268, 0
    %vm294 = vcmask 1041408
    %v296 = vsel %vm294, %v244, 0
    %298 = vmatpush.bf16.msra.mxu0 0
    %299 = vmatpush.bf16.msra.mxu0 0
    %300 = vmatpush.bf16.msra.mxu0 0
    %301 = vmatpush.bf16.msra.mxu0 0
    %302 = vmatpush.bf16.msra.mxu0 0
    %303 = vmatpush.bf16.msra.mxu0 0
    %304 = vmatpush.bf16.msra.mxu0 0
    %305 = vmatpush.bf16.msra.mxu0 %v296
    %306 = vmatmul.bf16.gmra.mxu0 %v271
    %v307 = vpop.f32.mrf.mxu0
    %v308 = vadd.f32 0.0, %v307
    %v309 = vpop.f32.mrf.mxu0
    %v310 = vadd.f32 0.0, %v309
    %311 = vmatmul.bf16.gmra.mxu0 %v274
    %v312 = vpop.f32.mrf.mxu0
    %v313 = vadd.f32 0.0, %v312
    %v314 = vpop.f32.mrf.mxu0
    %v315 = vadd.f32 0.0, %v314
    %316 = vmatmul.bf16.gmra.mxu0 %v277
    %v317 = vpop.f32.mrf.mxu0
    %v318 = vadd.f32 0.0, %v317
    %v319 = vpop.f32.mrf.mxu0
    %v320 = vadd.f32 0.0, %v319
    %321 = vmatmul.bf16.gmra.mxu0 %v280
    %v322 = vpop.f32.mrf.mxu0
    %v323 = vadd.f32 0.0, %v322
    %v324 = vpop.f32.mrf.mxu0
    %v325 = vadd.f32 0.0, %v324
    %326 = vmatmul.bf16.gmra.mxu0 %v283
    %v327 = vpop.f32.mrf.mxu0
    %v328 = vadd.f32 0.0, %v327
    %v329 = vpop.f32.mrf.mxu0
    %v330 = vadd.f32 0.0, %v329
    %331 = vmatmul.bf16.gmra.mxu0 %v286
    %v332 = vpop.f32.mrf.mxu0
    %v333 = vadd.f32 0.0, %v332
    %v334 = vpop.f32.mrf.mxu0
    %v335 = vadd.f32 0.0, %v334
    %336 = vmatmul.bf16.gmra.mxu0 %v289
    %v337 = vpop.f32.mrf.mxu0
    %v338 = vadd.f32 0.0, %v337
    %v339 = vpop.f32.mrf.mxu0
    %v340 = vadd.f32 0.0, %v339
    %341 = vmatmul.bf16.gmra.mxu0 %v292
    %v342 = vpop.f32.mrf.mxu0
    %v343 = vadd.f32 0.0, %v342
    %v344 = vpop.f32.mrf.mxu0
    %v345 = vadd.f32 0.0, %v344
    %346 = vdwg.mxu0
    %v363 = vunpack.c.l.b16 %v23
    %v364 = vunpack.c.l.b16 %v24
    %v365 = vunpack.c.l.b16 %v25
    %v366 = vunpack.c.l.b16 %v26
    %v367 = vunpack.c.l.b16 %v27
    %v368 = vunpack.c.l.b16 %v28
    %v369 = vunpack.c.l.b16 %v29
    %v370 = vunpack.c.l.b16 %v30
    %v371 = vunpack.c.l.b16 %v31
    %v372 = vunpack.c.l.b16 %v32
    %v373 = vunpack.c.l.b16 %v33
    %v374 = vunpack.c.l.b16 %v34
    %v375 = vunpack.c.l.b16 %v35
    %v376 = vunpack.c.l.b16 %v36
    %v377 = vunpack.c.l.b16 %v37
    %v378 = vunpack.c.l.b16 %v38
    %v379 = vpack.c.b16 %v364, %v363
    %v380 = vpack.c.b16 %v366, %v365
    %v381 = vpack.c.b16 %v368, %v367
    %v382 = vpack.c.b16 %v370, %v369
    %v383 = vpack.c.b16 %v372, %v371
    %v384 = vpack.c.b16 %v374, %v373
    %v385 = vpack.c.b16 %v376, %v375
    %v386 = vpack.c.b16 %v378, %v377
    %v388 = vsel %vm269, %v379, 0
    %v391 = vsel %vm269, %v380, 0
    %v394 = vsel %vm269, %v381, 0
    %v397 = vsel %vm269, %v382, 0
    %v400 = vsel %vm269, %v383, 0
    %v403 = vsel %vm269, %v384, 0
    %v406 = vsel %vm269, %v385, 0
    %v409 = vsel %vm269, %v386, 0
    %v412 = vsel %vm294, %v39, 0
    %414 = vmatpush.bf16.msra.mxu0 0
    %415 = vmatpush.bf16.msra.mxu0 0
    %416 = vmatpush.bf16.msra.mxu0 0
    %417 = vmatpush.bf16.msra.mxu0 0
    %418 = vmatpush.bf16.msra.mxu0 0
    %419 = vmatpush.bf16.msra.mxu0 0
    %420 = vmatpush.bf16.msra.mxu0 0
    %421 = vmatpush.bf16.msra.mxu0 %v412
    %422 = vmatmul.bf16.gmra.mxu0 %v388
    %v423 = vpop.f32.mrf.mxu0
    %v424 = vadd.f32 %v308, %v423
    %v425 = vpop.f32.mrf.mxu0
    %v426 = vadd.f32 %v310, %v425
    %427 = vmatmul.bf16.gmra.mxu0 %v391
    %v428 = vpop.f32.mrf.mxu0
    %v429 = vadd.f32 %v313, %v428
    %v430 = vpop.f32.mrf.mxu0
    %v431 = vadd.f32 %v315, %v430
    %432 = vmatmul.bf16.gmra.mxu0 %v394
    %v433 = vpop.f32.mrf.mxu0
    %v434 = vadd.f32 %v318, %v433
    %v435 = vpop.f32.mrf.mxu0
    %v436 = vadd.f32 %v320, %v435
    %437 = vmatmul.bf16.gmra.mxu0 %v397
    %v438 = vpop.f32.mrf.mxu0
    %v439 = vadd.f32 %v323, %v438
    %v440 = vpop.f32.mrf.mxu0
    %v441 = vadd.f32 %v325, %v440
    %442 = vmatmul.bf16.gmra.mxu0 %v400
    %v443 = vpop.f32.mrf.mxu0
    %v444 = vadd.f32 %v328, %v443
    %v445 = vpop.f32.mrf.mxu0
    %v446 = vadd.f32 %v330, %v445
    %447 = vmatmul.bf16.gmra.mxu0 %v403
    %v448 = vpop.f32.mrf.mxu0
    %v449 = vadd.f32 %v333, %v448
    %v450 = vpop.f32.mrf.mxu0
    %v451 = vadd.f32 %v335, %v450
    %452 = vmatmul.bf16.gmra.mxu0 %v406
    %v453 = vpop.f32.mrf.mxu0
    %v454 = vadd.f32 %v338, %v453
    %v455 = vpop.f32.mrf.mxu0
    %v456 = vadd.f32 %v340, %v455
    %457 = vmatmul.bf16.gmra.mxu0 %v409
    %v458 = vpop.f32.mrf.mxu0
    %v459 = vadd.f32 %v343, %v458
    %v460 = vpop.f32.mrf.mxu0
    %v461 = vadd.f32 %v345, %v460
    %462 = vdwg.mxu0
    %v463 = vld [vmem:[%s0] sm:$0xe]
    %v464 = vld [vmem:[%s0 + $0xc] sm:$0xe]
    %v465 = vld [vmem:[%s0 + $0x18] sm:$0xe]
    %v466 = vld [vmem:[%s0 + $0x24] sm:$0xe]
    %v467 = vld [vmem:[%s0 + $0x30] sm:$0xe]
    %v468 = vld [vmem:[%s0 + $0x3c] sm:$0xe]
    %v469 = vld [vmem:[%s0 + $0x48] sm:$0xe]
    %v470 = vld [vmem:[%s0 + $0x54] sm:$0xe]
    %vm487 = vcmask 1042432
    %vm488 = vcmask 1046532
    %vm489 = vmor %vm487, %vm488
    %v490 = vrot.slane %v463, 5
    %v491 = vrot.slane %v490, 4
    %v492 = vrot.slane %v24, 5
    %v493 = vsel %vm489, %v491, %v492
    %v494 = vrot.slane %v492, 4
    %v495 = vrot.slane %v40, 5
    %v496 = vsel %vm489, %v494, %v495
    %v497 = vrot.slane %v464, 5
    %v498 = vrot.slane %v497, 4
    %v499 = vrot.slane %v26, 5
    %v500 = vsel %vm489, %v498, %v499
    %v501 = vrot.slane %v499, 4
    %v502 = vrot.slane %v41, 5
    %v503 = vsel %vm489, %v501, %v502
    %v504 = vrot.slane %v465, 5
    %v505 = vrot.slane %v504, 4
    %v506 = vrot.slane %v28, 5
    %v507 = vsel %vm489, %v505, %v506
    %v508 = vrot.slane %v506, 4
    %v509 = vrot.slane %v42, 5
    %v510 = vsel %vm489, %v508, %v509
    %v511 = vrot.slane %v466, 5
    %v512 = vrot.slane %v511, 4
    %v513 = vrot.slane %v30, 5
    %v514 = vsel %vm489, %v512, %v513
    %v515 = vrot.slane %v513, 4
    %v516 = vrot.slane %v43, 5
    %v517 = vsel %vm489, %v515, %v516
    %v518 = vrot.slane %v467, 5
    %v519 = vrot.slane %v518, 4
    %v520 = vrot.slane %v32, 5
    %v521 = vsel %vm489, %v519, %v520
    %v522 = vrot.slane %v520, 4
    %v523 = vrot.slane %v44, 5
    %v524 = vsel %vm489, %v522, %v523
    %v525 = vrot.slane %v468, 5
    %v526 = vrot.slane %v525, 4
    %v527 = vrot.slane %v34, 5
    %v528 = vsel %vm489, %v526, %v527
    %v529 = vrot.slane %v527, 4
    %v530 = vrot.slane %v45, 5
    %v531 = vsel %vm489, %v529, %v530
    %v532 = vrot.slane %v469, 5
    %v533 = vrot.slane %v532, 4
    %v534 = vrot.slane %v36, 5
    %v535 = vsel %vm489, %v533, %v534
    %v536 = vrot.slane %v534, 4
    %v537 = vrot.slane %v46, 5
    %v538 = vsel %vm489, %v536, %v537
    %v539 = vrot.slane %v470, 5
    %v540 = vrot.slane %v539, 4
    %v541 = vrot.slane %v38, 5
    %v542 = vsel %vm489, %v540, %v541
    %v543 = vrot.slane %v541, 4
    %v544 = vrot.slane %v47, 5
    %v545 = vsel %vm489, %v543, %v544
    %s546 = scalar_lea.vmem %s1, 4
    %v547 = vld [vmem:[%s546] sm:$0x3]
    %v548 = vunpack.c.l.b16 %v493
    %v549 = vunpack.c.l.b16 %v496
    %v550 = vunpack.c.l.b16 %v500
    %v551 = vunpack.c.l.b16 %v503
    %v552 = vunpack.c.l.b16 %v507
    %v553 = vunpack.c.l.b16 %v510
    %v554 = vunpack.c.l.b16 %v514
    %v555 = vunpack.c.l.b16 %v517
    %v556 = vunpack.c.l.b16 %v521
    %v557 = vunpack.c.l.b16 %v524
    %v558 = vunpack.c.l.b16 %v528
    %v559 = vunpack.c.l.b16 %v531
    %v560 = vunpack.c.l.b16 %v535
    %v561 = vunpack.c.l.b16 %v538
    %v562 = vunpack.c.l.b16 %v542
    %v563 = vunpack.c.l.b16 %v545
    %v564 = vpack.c.b16 %v549, %v548
    %v565 = vpack.c.b16 %v551, %v550
    %v566 = vpack.c.b16 %v553, %v552
    %v567 = vpack.c.b16 %v555, %v554
    %v568 = vpack.c.b16 %v557, %v556
    %v569 = vpack.c.b16 %v559, %v558
    %v570 = vpack.c.b16 %v561, %v560
    %v571 = vpack.c.b16 %v563, %v562
    %v573 = vsel %vm269, %v564, 0
    %v576 = vsel %vm269, %v565, 0
    %v579 = vsel %vm269, %v566, 0
    %v582 = vsel %vm269, %v567, 0
    %v585 = vsel %vm269, %v568, 0
    %v588 = vsel %vm269, %v569, 0
    %v591 = vsel %vm269, %v570, 0
    %v594 = vsel %vm269, %v571, 0
    %v597 = vsel %vm294, %v547, 0
    %599 = vmatpush.bf16.msra.mxu0 0
    %600 = vmatpush.bf16.msra.mxu0 0
    %601 = vmatpush.bf16.msra.mxu0 0
    %602 = vmatpush.bf16.msra.mxu0 0
    %603 = vmatpush.bf16.msra.mxu0 0
    %604 = vmatpush.bf16.msra.mxu0 0
    %605 = vmatpush.bf16.msra.mxu0 0
    %606 = vmatpush.bf16.msra.mxu0 %v597
    %607 = vmatmul.bf16.gmra.mxu0 %v573
    %v608 = vpop.f32.mrf.mxu0
    %v609 = vadd.f32 0.0, %v608
    %v610 = vpop.f32.mrf.mxu0
    %v611 = vadd.f32 0.0, %v610
    %612 = vmatmul.bf16.gmra.mxu0 %v576
    %v613 = vpop.f32.mrf.mxu0
    %v614 = vadd.f32 0.0, %v613
    %v615 = vpop.f32.mrf.mxu0
    %v616 = vadd.f32 0.0, %v615
    %617 = vmatmul.bf16.gmra.mxu0 %v579
    %v618 = vpop.f32.mrf.mxu0
    %v619 = vadd.f32 0.0, %v618
    %v620 = vpop.f32.mrf.mxu0
    %v621 = vadd.f32 0.0, %v620
    %622 = vmatmul.bf16.gmra.mxu0 %v582
    %v623 = vpop.f32.mrf.mxu0
    %v624 = vadd.f32 0.0, %v623
    %v625 = vpop.f32.mrf.mxu0
    %v626 = vadd.f32 0.0, %v625
    %627 = vmatmul.bf16.gmra.mxu0 %v585
    %v628 = vpop.f32.mrf.mxu0
    %v629 = vadd.f32 0.0, %v628
    %v630 = vpop.f32.mrf.mxu0
    %v631 = vadd.f32 0.0, %v630
    %632 = vmatmul.bf16.gmra.mxu0 %v588
    %v633 = vpop.f32.mrf.mxu0
    %v634 = vadd.f32 0.0, %v633
    %v635 = vpop.f32.mrf.mxu0
    %v636 = vadd.f32 0.0, %v635
    %637 = vmatmul.bf16.gmra.mxu0 %v591
    %v638 = vpop.f32.mrf.mxu0
    %v639 = vadd.f32 0.0, %v638
    %v640 = vpop.f32.mrf.mxu0
    %v641 = vadd.f32 0.0, %v640
    %642 = vmatmul.bf16.gmra.mxu0 %v594
    %v643 = vpop.f32.mrf.mxu0
    %v644 = vadd.f32 0.0, %v643
    %v645 = vpop.f32.mrf.mxu0
    %v646 = vadd.f32 0.0, %v645
    %647 = vdwg.mxu0
    %v648 = vadd.f32 %v424, %v609
    %v649 = vadd.f32 %v426, %v611
    %v650 = vadd.f32 %v429, %v614
    %v651 = vadd.f32 %v431, %v616
    %v652 = vadd.f32 %v434, %v619
    %v653 = vadd.f32 %v436, %v621
    %v654 = vadd.f32 %v439, %v624
    %v655 = vadd.f32 %v441, %v626
    %v656 = vadd.f32 %v444, %v629
    %v657 = vadd.f32 %v446, %v631
    %v658 = vadd.f32 %v449, %v634
    %v659 = vadd.f32 %v451, %v636
    %v660 = vadd.f32 %v454, %v639
    %v661 = vadd.f32 %v456, %v641
    %v662 = vadd.f32 %v459, %v644
    %v663 = vadd.f32 %v461, %v646
    %v664 = vld [vmem:[%s2] sm:$0x1]
    %v666 = vperm.slane %v664, 0
    %v668 = vadd.f32 %v648, %v666
    %v669 = vadd.f32 %v649, %v666
    %v670 = vadd.f32 %v650, %v666
    %v671 = vadd.f32 %v651, %v666
    %v672 = vadd.f32 %v652, %v666
    %v673 = vadd.f32 %v653, %v666
    %v674 = vadd.f32 %v654, %v666
    %v675 = vadd.f32 %v655, %v666
    %v676 = vadd.f32 %v656, %v666
    %v677 = vadd.f32 %v657, %v666
    %v678 = vadd.f32 %v658, %v666
    %v679 = vadd.f32 %v659, %v666
    %v680 = vadd.f32 %v660, %v666
    %v681 = vadd.f32 %v661, %v666
    %v682 = vadd.f32 %v662, %v666
    %v683 = vadd.f32 %v663, %v666
    %v684 = vmax.f32 %v668, 0.0
    %v685 = vmax.f32 %v669, 0.0
    %v686 = vmax.f32 %v670, 0.0
    %v687 = vmax.f32 %v671, 0.0
    %v688 = vmax.f32 %v672, 0.0
    %v689 = vmax.f32 %v673, 0.0
    %v690 = vmax.f32 %v674, 0.0
    %v691 = vmax.f32 %v675, 0.0
    %v692 = vmax.f32 %v676, 0.0
    %v693 = vmax.f32 %v677, 0.0
    %v694 = vmax.f32 %v678, 0.0
    %v695 = vmax.f32 %v679, 0.0
    %v696 = vmax.f32 %v680, 0.0
    %v697 = vmax.f32 %v681, 0.0
    %v698 = vmax.f32 %v682, 0.0
    %v699 = vmax.f32 %v683, 0.0
    %v700 = vld [vmem:[%s3] sm:$0xff]
    %v701 = vld [vmem:[%s3 + $0x8] sm:$0xff]
    %v702 = vmul.f32 %v684, %v700
    %v703 = vmul.f32 %v685, %v701
    %v704 = vmul.f32 %v686, %v700
    %v705 = vmul.f32 %v687, %v701
    %v706 = vmul.f32 %v688, %v700
    %v707 = vmul.f32 %v689, %v701
    %v708 = vmul.f32 %v690, %v700
    %v709 = vmul.f32 %v691, %v701
    %v710 = vmul.f32 %v692, %v700
    %v711 = vmul.f32 %v693, %v701
    %v712 = vmul.f32 %v694, %v700
    %v713 = vmul.f32 %v695, %v701
    %v714 = vmul.f32 %v696, %v700
    %v715 = vmul.f32 %v697, %v701
    %v716 = vmul.f32 %v698, %v700
    %v717 = vmul.f32 %v699, %v701
    %vm718 = vcmask 64512
    %v719 = vsel %vm718, %v702, 0.0
    %v720 = vsel %vm718, %v703, 0.0
    %v721 = vadd.f32 %v719, %v720
    %v722 = vrot.slane %v721, 4
    %v723 = vadd.f32 %v721, %v722
    %v724 = vrot.slane %v723, 2
    %v725 = vadd.f32 %v723, %v724
    %v726 = vrot.slane %v725, 1
    %v727 = vadd.f32 %v725, %v726
    %v728 = vsel %vm718, %v704, 0.0
    %v729 = vsel %vm718, %v705, 0.0
    %v730 = vadd.f32 %v728, %v729
    %v731 = vrot.slane %v730, 4
    %v732 = vadd.f32 %v730, %v731
    %v733 = vrot.slane %v732, 2
    %v734 = vadd.f32 %v732, %v733
    %v735 = vrot.slane %v734, 1
    %v736 = vadd.f32 %v734, %v735
    %v737 = vsel %vm718, %v706, 0.0
    %v738 = vsel %vm718, %v707, 0.0
    %v739 = vadd.f32 %v737, %v738
    %v740 = vrot.slane %v739, 4
    %v741 = vadd.f32 %v739, %v740
    %v742 = vrot.slane %v741, 2
    %v743 = vadd.f32 %v741, %v742
    %v744 = vrot.slane %v743, 1
    %v745 = vadd.f32 %v743, %v744
    %v746 = vsel %vm718, %v708, 0.0
    %v747 = vsel %vm718, %v709, 0.0
    %v748 = vadd.f32 %v746, %v747
    %v749 = vrot.slane %v748, 4
    %v750 = vadd.f32 %v748, %v749
    %v751 = vrot.slane %v750, 2
    %v752 = vadd.f32 %v750, %v751
    %v753 = vrot.slane %v752, 1
    %v754 = vadd.f32 %v752, %v753
    %v755 = vsel %vm718, %v710, 0.0
    %v756 = vsel %vm718, %v711, 0.0
    %v757 = vadd.f32 %v755, %v756
    %v758 = vrot.slane %v757, 4
    %v759 = vadd.f32 %v757, %v758
    %v760 = vrot.slane %v759, 2
    %v761 = vadd.f32 %v759, %v760
    %v762 = vrot.slane %v761, 1
    %v763 = vadd.f32 %v761, %v762
    %v764 = vsel %vm718, %v712, 0.0
    %v765 = vsel %vm718, %v713, 0.0
    %v766 = vadd.f32 %v764, %v765
    %v767 = vrot.slane %v766, 4
    %v768 = vadd.f32 %v766, %v767
    %v769 = vrot.slane %v768, 2
    %v770 = vadd.f32 %v768, %v769
    %v771 = vrot.slane %v770, 1
    %v772 = vadd.f32 %v770, %v771
    %v773 = vsel %vm718, %v714, 0.0
    %v774 = vsel %vm718, %v715, 0.0
    %v775 = vadd.f32 %v773, %v774
    %v776 = vrot.slane %v775, 4
    %v777 = vadd.f32 %v775, %v776
    %v778 = vrot.slane %v777, 2
    %v779 = vadd.f32 %v777, %v778
    %v780 = vrot.slane %v779, 1
    %v781 = vadd.f32 %v779, %v780
    %v782 = vsel %vm718, %v716, 0.0
    %v783 = vsel %vm718, %v717, 0.0
    %v784 = vadd.f32 %v782, %v783
    %v785 = vrot.slane %v784, 4
    %v786 = vadd.f32 %v784, %v785
    %v787 = vrot.slane %v786, 2
    %v788 = vadd.f32 %v786, %v787
    %v789 = vrot.slane %v788, 1
    %v790 = vadd.f32 %v788, %v789
    %vm799 = vcmask 1041409
    %v800 = vsel %vm799, %v736, %v727
    %vm801 = vcmask 1042434
    %v802 = vsel %vm801, %v745, %v800
    %vm803 = vcmask 1043459
    %v804 = vsel %vm803, %v754, %v802
    %vm805 = vcmask 1044484
    %v806 = vsel %vm805, %v763, %v804
    %vm807 = vcmask 1045509
    %v808 = vsel %vm807, %v772, %v806
    %vm809 = vcmask 1046534
    %v810 = vsel %vm809, %v781, %v808
    %vm811 = vcmask 1047559
    %v812 = vsel %vm811, %v790, %v810
    %v814 = vsel %vm718, %v812, 0.0
    %815 = vadd.xlane.f32.xlu0 %v814
    %v816 = vpop.xlane.xlu0 %815
    %s817 = sld [smem:[#allocation2]]
    %v818 = vstv %s817
    %v819 = vadd.f32 %v816, %v818
    %v820 = vxor.u32 %v819, 2147483648
    %v821 = vmul.f32 %v820, 1.442695
    %v822 = vpow.pop %v821
    %v823 = vadd.f32 %v822, 1.0
    %v824 = vrcp.pop %v823
    %v825 = vmul.f32 %v823, %v824
    %v826 = vsub.f32 1.0, %v825
    %v827 = vmul.f32 %v824, %v826
    %v828 = vadd.f32 %v824, %v827
    %vm829 = vweird.f32 %v823
    %vm830 = vweird.f32 %v824
    %vm831 = vmor %vm829, %vm830
    %v832 = vsel %vm831, %v824, %v828
    %v833 = vand.u32 2147483647, %v823
    %vm834 = vcmp.eq.f32.partialorder %v833, 8.507059e+37
    %v835 = vand.u32 %v823, 2147483648
    %v836 = vor.u32 1.1754944e-38, %v835
    %v837 = vsel %vm834, %v836, %v832
    %v838 = vmul.f32 1.0, %v837
    %839 = vxpose.xlu0.b32.start [1/16] %v838, 128
    %840 = vxpose.xlu0.b32.cont [2/16] 0.0, 128
    %841 = vxpose.xlu0.b32.cont [3/16] 0.0, 128
    %842 = vxpose.xlu0.b32.cont [4/16] 0.0, 128
    %843 = vxpose.xlu0.b32.cont [5/16] 0.0, 128
    %844 = vxpose.xlu0.b32.cont [6/16] 0.0, 128
    %845 = vxpose.xlu0.b32.cont [7/16] 0.0, 128
    %846 = vxpose.xlu0.b32.cont [8/16] 0.0, 128
    %847 = vxpose.xlu0.b32.cont [9/16] 0.0, 128
    %848 = vxpose.xlu0.b32.cont [10/16] 0.0, 128
    %849 = vxpose.xlu0.b32.cont [11/16] 0.0, 128
    %850 = vxpose.xlu0.b32.cont [12/16] 0.0, 128
    %851 = vxpose.xlu0.b32.cont [13/16] 0.0, 128
    %852 = vxpose.xlu0.b32.cont [14/16] 0.0, 128
    %853 = vxpose.xlu0.b32.cont [15/16] 0.0, 128
    %854 = vxpose.xlu0.b32.end [16/16] 0.0, 128
    %v855 = vpop.trf.xlu0
    %v856 = vpop.trf.xlu0
    %v857 = vpop.trf.xlu0
    %v858 = vpop.trf.xlu0
    %v859 = vpop.trf.xlu0
    %v860 = vpop.trf.xlu0
    %v861 = vpop.trf.xlu0
    %v862 = vpop.trf.xlu0
    %v863 = vpop.trf.xlu0
    %v864 = vpop.trf.xlu0
    %v865 = vpop.trf.xlu0
    %v866 = vpop.trf.xlu0
    %v867 = vpop.trf.xlu0
    %v868 = vpop.trf.xlu0
    %v869 = vpop.trf.xlu0
    %v870 = vpop.trf.xlu0
    %vm871 = vcmask 57344
    %872 = vst.msk [vmem:[#allocation3] sm:$0x1] %vm871, %v855
    // Predicated region
    $region22: #{tpu_custom_call.1} parent=1 // pred_check
      _
    $region23: #{tpu_custom_call.1} parent=1 // pred_check_branch
      %874 = sbr.rel (0) target = $region25
    $region24: #{tpu_custom_call.1} parent=1 // pred_region
      %876 = vsyncadd [#allocation4], 0
      %s878 = sshll.u32 [#allocation3], 4
      %s879 = int_to_ptr.vmem [resolvable:$true] %s878
      %s880 = sshll.u32 %s5, 4
      %s881 = int_to_ptr.hbm [resolvable:$true] %s880
      %883 = dma.vmem_to_hbm [thread:$0]  %s879, 16, %s881, [#allocation4]
    $region25: #{tpu_custom_call.1} parent=1 // pred_fallthru
      _
    // Predicated region
    $region26: #{tpu_custom_call.1} parent=1 // pred_check
      _
    $region27: #{tpu_custom_call.1} parent=1 // pred_check_branch
      %885 = sbr.rel (0) target = $region29
    $region28: #{tpu_custom_call.1} parent=1 // pred_region
      %887 = dma.done [#allocation4], 16
    $region29: #{tpu_custom_call.1} parent=1 // pred_fallthru
      _
    %888 = vsyncpa [#allocation4], 1

</llo_original>
